<compile_context>
chip_gen: v5e
topology: v5e:2x2
jax: 0.10.0
libtpu: 0.0.40
codegen_flags: <defaults>
</compile_context>

<pallas_src>
import jax
import jax.numpy as jnp
from jax.experimental import pallas as pl
from jax.experimental.pallas import tpu as pltpu

_PY = 8      # sublane-aligned row offset of the interior inside the padded scratch
_PX = 128    # lane-aligned col offset of the interior inside the padded scratch


def _pick_channel_tile(C, H, W, itemsize, budget_bytes=4 << 20):
    """Largest divisor of C whose (tc, H, W) input block stays under budget.

    The block is double-buffered by the pipeline, so real VMEM use is ~2x this.
    """
    for tc in range(C, 0, -1):
        if C % tc == 0 and tc * H * W * itemsize <= budget_bytes:
            return tc
    return 1


def avg_max_spatial_attention_2d(x, weight, bias=None, *, channel_tile=None):
    """x: (N, C, H, W); weight: (1, 1, 3, 3); bias: (1,) or None."""
    N, C, H, W = x.shape
    if bias is None:
        bias = jnp.zeros((1,), dtype=jnp.float32)
    if channel_tile is None:
        channel_tile = _pick_channel_tile(C, H, W, x.dtype.itemsize)
    tc = int(channel_tile)
    assert C % tc == 0, "channel_tile must divide C"

    w_flat = weight.reshape(9).astype(jnp.float32)
    b = bias.reshape(1).astype(jnp.float32)
    inv_c = 1.0 / float(C)

    def kernel(w_ref, b_ref, x_ref, o_ref, max_ref, pad_ref):
        # w_ref  : SMEM (9,)   flattened 3x3 conv weight (f32)
        # b_ref  : SMEM (1,)   conv bias (f32)
        # x_ref  : VMEM (1, tc, H, W) one channel-tile of one batch element
        # o_ref  : VMEM (1, 1, H, W)  output plane (resident across the C axis)
        # max_ref: VMEM (H, W) f32    running channel max
        # pad_ref: VMEM (H+16, W+256) f32; interior [8:8+H, 128:128+W] holds the
        #          running channel sum; the surrounding cells stay zero and act
        #          as the SAME-padding border for the 3x3 conv taps.
        n = pl.program_id(0)
        c = pl.program_id(1)
        nc = pl.num_programs(1)

        # Zero the padded scratch once for the entire kernel; the border cells
        # are never written afterwards, so they remain the conv zero-padding.
        @pl.when((n == 0) & (c == 0))
        def _():
            pad_ref[...] = jnp.zeros_like(pad_ref)

        # Per-output-plane init of the running channel reductions.
        @pl.when(c == 0)
        def _():
            max_ref[...] = jnp.full_like(max_ref, -jnp.inf)
            pad_ref[_PY:_PY + H, _PX:_PX + W] = jnp.zeros((H, W), jnp.float32)

        # Running channel reductions over this channel tile (f32 accumulate).
        xb = x_ref[0].astype(jnp.float32)                       # (tc, H, W)
        max_ref[...] = jnp.maximum(max_ref[...], jnp.max(xb, axis=0))
        pad_ref[_PY:_PY + H, _PX:_PX + W] = (
            pad_ref[_PY:_PY + H, _PX:_PX + W] + jnp.sum(xb, axis=0))

        # Finalize: mean + max, then 3x3 conv (padding=1) on the VPU.
        @pl.when(c == nc - 1)
        def _():
            s = pad_ref[_PY:_PY + H, _PX:_PX + W] * inv_c + max_ref[...]
            pad_ref[_PY:_PY + H, _PX:_PX + W] = s               # aligned store
            acc = jnp.full((H, W), b_ref[0], dtype=jnp.float32)
            for ky in range(3):
                for kx in range(3):
                    tap = pad_ref[_PY + ky - 1:_PY + ky - 1 + H,
                                  _PX + kx - 1:_PX + kx - 1 + W]
                    acc = acc + w_ref[ky * 3 + kx] * tap
            o_ref[0, 0] = acc.astype(o_ref.dtype)

    return pl.pallas_call(
        kernel,
        out_shape=jax.ShapeDtypeStruct((N, 1, H, W), x.dtype),
        grid_spec=pltpu.PrefetchScalarGridSpec(
            num_scalar_prefetch=0,
            grid=(N, C // tc),                                   # C axis innermost
            in_specs=[
                pl.BlockSpec(memory_space=pltpu.MemorySpace.SMEM),   # weight (9,)
                pl.BlockSpec(memory_space=pltpu.MemorySpace.SMEM),   # bias   (1,)
                pl.BlockSpec((1, tc, H, W), lambda n, c: (n, c, 0, 0)),
            ],
            out_specs=pl.BlockSpec((1, 1, H, W), lambda n, c: (n, 0, 0, 0)),
            scratch_shapes=[
                pltpu.VMEM((H, W), jnp.float32),                     # running max
                pltpu.VMEM((H + 2 * _PY, W + 2 * _PX), jnp.float32), # padded sum
            ],
        ),
        compiler_params=pltpu.CompilerParams(
            dimension_semantics=("parallel", "arbitrary"),
            vmem_limit_bytes=48 * 1024 * 1024,
        ),
    )(w_flat, b, x)


def _reference(x, weight, bias):
    # Pure-JAX reference with matching accumulation structure.
    s = jnp.mean(x.astype(jnp.float32), axis=1) + jnp.max(
        x.astype(jnp.float32), axis=1)                           # (N, H, W)
    sp = jnp.pad(s, ((0, 0), (1, 1), (1, 1)))
    N, H, W = s.shape
    acc = jnp.full((N, H, W), bias[0], dtype=jnp.float32)
    for ky in range(3):
        for kx in range(3):
            acc = acc + weight[0, 0, ky, kx] * sp[:, ky:ky + H, kx:kx + W]
    return acc[:, None, :, :]


if __name__ == "__main__":
    key = jax.random.PRNGKey(0)
    kx, kw, kb = jax.random.split(key, 3)

    N, C, H, W = 2, 4, 16, 16
    x = jax.random.normal(kx, (N, C, H, W), dtype=jnp.float32)

    # Deterministic synthetic conv parameters (shapes from __init__; see note above).
    weight = 0.1 * jax.random.normal(kw, (1, 1, 3, 3), dtype=jnp.float32)
    bias = 0.05 * jax.random.normal(kb, (1,), dtype=jnp.float32)

    # channel_tile=2 -> grid=(N, 2): exercises the cross-step running max/sum path.
    out = avg_max_spatial_attention_2d(x, weight, bias, channel_tile=2)
    out = jax.block_until_ready(out)

    ref = _reference(x, weight, bias)
    assert out.shape == (N, 1, H, W)
    assert jnp.max(jnp.abs(out.astype(jnp.float32) - ref)) < 1e-5

    print("KERNEL_OK")
</pallas_src>

<mosaic_0001>
module attributes {stable_mosaic.version = 11 : i64} {
  func.func @kernel(%arg0: i32, %arg1: i32, %arg2: memref<9xf32, #tpu.memory_space<smem>>, %arg3: memref<1xf32, #tpu.memory_space<smem>>, %arg4: memref<1x2x16x16xf32, #tpu.memory_space<vmem>>, %arg5: memref<1x1x16x16xf32, #tpu.memory_space<vmem>>, %arg6: memref<16x16xf32, #tpu.memory_space<vmem>>, %arg7: memref<32x272xf32, #tpu.memory_space<vmem>>) attributes {dimension_semantics = [#tpu.dimension_semantics<parallel>, #tpu.dimension_semantics<arbitrary>], iteration_bounds = array<i64: 2, 2>, scalar_prefetch = 0 : i64, scratch_operands = 2 : i64, tpu.core_type = #tpu.core_type<tc>, window_params = [{transform_indices = @transform_0, window_bounds = array<i64: 9>}, {transform_indices = @transform_1, window_bounds = array<i64: 1>}, {transform_indices = @transform_2, window_bounds = array<i64: 1, 2, 16, 16>}, {transform_indices = @transform_3, window_bounds = array<i64: 1, 1, 16, 16>}]} {
    %c0_i32 = arith.constant 0 : i32
    %0 = arith.cmpi eq, %arg0, %c0_i32 : i32
    %c0_i32_0 = arith.constant 0 : i32
    %1 = arith.cmpi eq, %arg1, %c0_i32_0 : i32
    %2 = arith.andi %0, %1 : i1
    %3 = arith.extui %2 : i1 to i32
    %c0_i32_1 = arith.constant 0 : i32
    %4 = arith.cmpi ne, %3, %c0_i32_1 : i32
    scf.if %4 {
      %cst_15 = arith.constant 0.000000e+00 : f32
      %21 = vector.broadcast %cst_15 : f32 to vector<32x272xf32>
      %c0_16 = arith.constant 0 : index
      %c0_17 = arith.constant 0 : index
      %22 = vector.load %arg7[%c0_16, %c0_17] : memref<32x272xf32, #tpu.memory_space<vmem>>, vector<32x272xf32>
      tpu.vector_store %arg7[%c0_16, %c0_17], %21 {strides = array<i32>} : memref<32x272xf32, #tpu.memory_space<vmem>>, vector<32x272xf32>,
    } else {
    }
    %c0_i32_2 = arith.constant 0 : i32
    %5 = arith.cmpi eq, %arg1, %c0_i32_2 : i32
    %6 = arith.extui %5 : i1 to i32
    %c0_i32_3 = arith.constant 0 : i32
    %7 = arith.cmpi ne, %6, %c0_i32_3 : i32
    scf.if %7 {
      %cst_15 = arith.constant 0xFF800000 : f32
      %21 = vector.broadcast %cst_15 : f32 to vector<16x16xf32>
      %c0_16 = arith.constant 0 : index
      %c0_17 = arith.constant 0 : index
      %22 = vector.load %arg6[%c0_16, %c0_17] : memref<16x16xf32, #tpu.memory_space<vmem>>, vector<16x16xf32>
      tpu.vector_store %arg6[%c0_16, %c0_17], %21 {strides = array<i32>} : memref<16x16xf32, #tpu.memory_space<vmem>>, vector<16x16xf32>,
      %cst_18 = arith.constant 0.000000e+00 : f32
      %23 = vector.broadcast %cst_18 : f32 to vector<16x16xf32>
      %c8_19 = arith.constant 8 : index
      %c128_20 = arith.constant 128 : index
      %24 = vector.load %arg7[%c8_19, %c128_20] : memref<32x272xf32, #tpu.memory_space<vmem>>, vector<16x16xf32>
      tpu.vector_store %arg7[%c8_19, %c128_20], %23 {strides = array<i32>} : memref<32x272xf32, #tpu.memory_space<vmem>>, vector<16x16xf32>,
    } else {
    }
    %c0 = arith.constant 0 : index
    %c0_4 = arith.constant 0 : index
    %c0_5 = arith.constant 0 : index
    %c0_6 = arith.constant 0 : index
    %8 = vector.load %arg4[%c0, %c0_4, %c0_5, %c0_6] : memref<1x2x16x16xf32, #tpu.memory_space<vmem>>, vector<1x2x16x16xf32>
    %9 = vector.shape_cast %8 : vector<1x2x16x16xf32> to vector<2x16x16xf32>
    %c0_7 = arith.constant 0 : index
    %c0_8 = arith.constant 0 : index
    %10 = vector.load %arg6[%c0_7, %c0_8] : memref<16x16xf32, #tpu.memory_space<vmem>>, vector<16x16xf32>
    %cst = arith.constant dense<0xFF800000> : vector<16x16xf32>
    %11 = vector.multi_reduction <maximumf>, %9, %cst [0] : vector<2x16x16xf32> to vector<16x16xf32>
    %12 = arith.maximumf %10, %11 : vector<16x16xf32>
    %c0_9 = arith.constant 0 : index
    %c0_10 = arith.constant 0 : index
    %13 = vector.load %arg6[%c0_9, %c0_10] : memref<16x16xf32, #tpu.memory_space<vmem>>, vector<16x16xf32>
    tpu.vector_store %arg6[%c0_9, %c0_10], %12 {strides = array<i32>} : memref<16x16xf32, #tpu.memory_space<vmem>>, vector<16x16xf32>,
    %c8 = arith.constant 8 : index
    %c128 = arith.constant 128 : index
    %14 = vector.load %arg7[%c8, %c128] : memref<32x272xf32, #tpu.memory_space<vmem>>, vector<16x16xf32>
    %cst_11 = arith.constant dense<0.000000e+00> : vector<16x16xf32>
    %15 = vector.multi_reduction <add>, %9, %cst_11 [0] : vector<2x16x16xf32> to vector<16x16xf32>
    %16 = arith.addf %14, %15 : vector<16x16xf32>
    %c8_12 = arith.constant 8 : index
    %c128_13 = arith.constant 128 : index
    %17 = vector.load %arg7[%c8_12, %c128_13] : memref<32x272xf32, #tpu.memory_space<vmem>>, vector<16x16xf32>
    tpu.vector_store %arg7[%c8_12, %c128_13], %16 {strides = array<i32>} : memref<32x272xf32, #tpu.memory_space<vmem>>, vector<16x16xf32>,
    %c1_i32 = arith.constant 1 : i32
    %18 = arith.cmpi eq, %arg1, %c1_i32 : i32
    %19 = arith.extui %18 : i1 to i32
    %c0_i32_14 = arith.constant 0 : i32
    %20 = arith.cmpi ne, %19, %c0_i32_14 : i32
    scf.if %20 {
      %c8_15 = arith.constant 8 : index
      %c128_16 = arith.constant 128 : index
      %21 = vector.load %arg7[%c8_15, %c128_16] : memref<32x272xf32, #tpu.memory_space<vmem>>, vector<16x16xf32>
      %cst_17 = arith.constant 2.500000e-01 : f32
      %22 = vector.broadcast %cst_17 : f32 to vector<16x16xf32>
      %23 = arith.mulf %21, %22 : vector<16x16xf32>
      %c0_18 = arith.constant 0 : index
      %c0_19 = arith.constant 0 : index
      %24 = vector.load %arg6[%c0_18, %c0_19] : memref<16x16xf32, #tpu.memory_space<vmem>>, vector<16x16xf32>
      %25 = arith.addf %23, %24 : vector<16x16xf32>
      %c8_20 = arith.constant 8 : index
      %c128_21 = arith.constant 128 : index
      %26 = vector.load %arg7[%c8_20, %c128_21] : memref<32x272xf32, #tpu.memory_space<vmem>>, vector<16x16xf32>
      tpu.vector_store %arg7[%c8_20, %c128_21], %25 {strides = array<i32>} : memref<32x272xf32, #tpu.memory_space<vmem>>, vector<16x16xf32>,
      %c0_22 = arith.constant 0 : index
      %27 = memref.load %arg3[%c0_22] : memref<1xf32, #tpu.memory_space<smem>>
      %28 = vector.broadcast %27 : f32 to vector<16x16xf32>
      %c7 = arith.constant 7 : index
      %c127 = arith.constant 127 : index
      %29 = vector.load %arg7[%c7, %c127] : memref<32x272xf32, #tpu.memory_space<vmem>>, vector<16x16xf32>
      %c0_23 = arith.constant 0 : index
      %30 = memref.load %arg2[%c0_23] : memref<9xf32, #tpu.memory_space<smem>>
      %31 = vector.broadcast %30 : f32 to vector<16x16xf32>
      %32 = arith.mulf %31, %29 : vector<16x16xf32>
      %33 = arith.addf %28, %32 : vector<16x16xf32>
      %c7_24 = arith.constant 7 : index
      %c128_25 = arith.constant 128 : index
      %34 = vector.load %arg7[%c7_24, %c128_25] : memref<32x272xf32, #tpu.memory_space<vmem>>, vector<16x16xf32>
      %c1 = arith.constant 1 : index
      %35 = memref.load %arg2[%c1] : memref<9xf32, #tpu.memory_space<smem>>
      %36 = vector.broadcast %35 : f32 to vector<16x16xf32>
      %37 = arith.mulf %36, %34 : vector<16x16xf32>
      %38 = arith.addf %33, %37 : vector<16x16xf32>
      %c7_26 = arith.constant 7 : index
      %c129 = arith.constant 129 : index
      %39 = vector.load %arg7[%c7_26, %c129] : memref<32x272xf32, #tpu.memory_space<vmem>>, vector<16x16xf32>
      %c2 = arith.constant 2 : index
      %40 = memref.load %arg2[%c2] : memref<9xf32, #tpu.memory_space<smem>>
      %41 = vector.broadcast %40 : f32 to vector<16x16xf32>
      %42 = arith.mulf %41, %39 : vector<16x16xf32>
      %43 = arith.addf %38, %42 : vector<16x16xf32>
      %c8_27 = arith.constant 8 : index
      %c127_28 = arith.constant 127 : index
      %44 = vector.load %arg7[%c8_27, %c127_28] : memref<32x272xf32, #tpu.memory_space<vmem>>, vector<16x16xf32>
      %c3 = arith.constant 3 : index
      %45 = memref.load %arg2[%c3] : memref<9xf32, #tpu.memory_space<smem>>
      %46 = vector.broadcast %45 : f32 to vector<16x16xf32>
      %47 = arith.mulf %46, %44 : vector<16x16xf32>
      %48 = arith.addf %43, %47 : vector<16x16xf32>
      %c8_29 = arith.constant 8 : index
      %c128_30 = arith.constant 128 : index
      %49 = vector.load %arg7[%c8_29, %c128_30] : memref<32x272xf32, #tpu.memory_space<vmem>>, vector<16x16xf32>
      %c4 = arith.constant 4 : index
      %50 = memref.load %arg2[%c4] : memref<9xf32, #tpu.memory_space<smem>>
      %51 = vector.broadcast %50 : f32 to vector<16x16xf32>
      %52 = arith.mulf %51, %49 : vector<16x16xf32>
      %53 = arith.addf %48, %52 : vector<16x16xf32>
      %c8_31 = arith.constant 8 : index
      %c129_32 = arith.constant 129 : index
      %54 = vector.load %arg7[%c8_31, %c129_32] : memref<32x272xf32, #tpu.memory_space<vmem>>, vector<16x16xf32>
      %c5 = arith.constant 5 : index
      %55 = memref.load %arg2[%c5] : memref<9xf32, #tpu.memory_space<smem>>
      %56 = vector.broadcast %55 : f32 to vector<16x16xf32>
      %57 = arith.mulf %56, %54 : vector<16x16xf32>
      %58 = arith.addf %53, %57 : vector<16x16xf32>
      %c9 = arith.constant 9 : index
      %c127_33 = arith.constant 127 : index
      %59 = vector.load %arg7[%c9, %c127_33] : memref<32x272xf32, #tpu.memory_space<vmem>>, vector<16x16xf32>
      %c6 = arith.constant 6 : index
      %60 = memref.load %arg2[%c6] : memref<9xf32, #tpu.memory_space<smem>>
      %61 = vector.broadcast %60 : f32 to vector<16x16xf32>
      %62 = arith.mulf %61, %59 : vector<16x16xf32>
      %63 = arith.addf %58, %62 : vector<16x16xf32>
      %c9_34 = arith.constant 9 : index
      %c128_35 = arith.constant 128 : index
      %64 = vector.load %arg7[%c9_34, %c128_35] : memref<32x272xf32, #tpu.memory_space<vmem>>, vector<16x16xf32>
      %c7_36 = arith.constant 7 : index
      %65 = memref.load %arg2[%c7_36] : memref<9xf32, #tpu.memory_space<smem>>
      %66 = vector.broadcast %65 : f32 to vector<16x16xf32>
      %67 = arith.mulf %66, %64 : vector<16x16xf32>
      %68 = arith.addf %63, %67 : vector<16x16xf32>
      %c9_37 = arith.constant 9 : index
      %c129_38 = arith.constant 129 : index
      %69 = vector.load %arg7[%c9_37, %c129_38] : memref<32x272xf32, #tpu.memory_space<vmem>>, vector<16x16xf32>
      %c8_39 = arith.constant 8 : index
      %70 = memref.load %arg2[%c8_39] : memref<9xf32, #tpu.memory_space<smem>>
      %71 = vector.broadcast %70 : f32 to vector<16x16xf32>
      %72 = arith.mulf %71, %69 : vector<16x16xf32>
      %73 = arith.addf %68, %72 : vector<16x16xf32>
      %c0_40 = arith.constant 0 : index
      %c0_41 = arith.constant 0 : index
      %c0_42 = arith.constant 0 : index
      %c0_43 = arith.constant 0 : index
      %74 = vector.load %arg5[%c0_40, %c0_41, %c0_42, %c0_43] : memref<1x1x16x16xf32, #tpu.memory_space<vmem>>, vector<1x1x16x16xf32>
      %75 = vector.shape_cast %74 : vector<1x1x16x16xf32> to vector<16x16xf32>
      %76 = vector.shape_cast %73 : vector<16x16xf32> to vector<1x1x16x16xf32>
      tpu.vector_store %arg5[%c0_40, %c0_41, %c0_42, %c0_43], %76 {strides = array<i32>} : memref<1x1x16x16xf32, #tpu.memory_space<vmem>>, vector<1x1x16x16xf32>,
    } else {
    }
    return
  }
  func.func @transform_0(%arg0: i32, %arg1: i32) -> i32 {
    %c0_i32 = arith.constant 0 : i32
    %c0_i32_0 = arith.constant 0 : i32
    return %c0_i32 : i32
  }
  func.func @transform_1(%arg0: i32, %arg1: i32) -> i32 {
    %c0_i32 = arith.constant 0 : i32
    %c0_i32_0 = arith.constant 0 : i32
    return %c0_i32 : i32
  }
  func.func @transform_2(%arg0: i32, %arg1: i32) -> (i32, i32, i32, i32) {
    %c0_i32 = arith.constant 0 : i32
    %c0_i32_0 = arith.constant 0 : i32
    %c0_i32_1 = arith.constant 0 : i32
    return %arg0, %arg1, %c0_i32, %c0_i32_0 : i32, i32, i32, i32
  }
  func.func @transform_3(%arg0: i32, %arg1: i32) -> (i32, i32, i32, i32) {
    %c0_i32 = arith.constant 0 : i32
    %c0_i32_0 = arith.constant 0 : i32
    %c0_i32_1 = arith.constant 0 : i32
    %c0_i32_2 = arith.constant 0 : i32
    return %arg0, %c0_i32, %c0_i32_0, %c0_i32_1 : i32, i32, i32, i32
  }
}

</mosaic_0001>

<llo_original>
// kernel: tpu_custom_call.1
$region0: #{tpu_custom_call.1}
  #allocation0 [shape = 'u32[]', space=smem, size = 0x4, offset = 0x4, fixed_abs, tag = 'smem constant byte address 0x4 - core index']
  #allocation1 [shape = 'u32[72,128]{1,0:T(1,128)}', space=vmem, size = 0x9000, scoped, tag = 'internal scratch']
  #allocation2 [shape = 'f32[16,16]{1,0:T(8,128)}', space=vmem, size = 0x2000, scoped, tag = 'scratch operand']
  #allocation3 [shape = 'f32[32,272]{1,0:T(8,128)}', space=vmem, size = 0xc000, scoped, tag = 'scratch operand']
  #allocation4 [shape = 'f32[1]{0:T(128)S(6)}', space=smem, size = 0x200, scoped, tag = 'scoped memory for tpu_custom_call.1']
  %s0 = inlined_call_operand.vmem [shape: f32[9], index: 0, kind: input, shape index: {}]
  %s1 = inlined_call_operand.<no memory space> [shape: f32[1], index: 1, kind: input, shape index: {}]
  %s2 = inlined_call_operand.hbm [shape: f32[2,4,16,16], index: 2, kind: input, shape index: {}]
  %s3 = inlined_call_operand.hbm [shape: f32[2,1,16,16], index: 3, kind: output, shape index: {}]
  %s4 = sld [smem:[#allocation0]]
  $region65: #{tpu_custom_call.1} parent=0
    _
  %s6 = ssub.s32 1, %s4
  %s7 = scalar_select 0, %s6, %s4
  %8 = sst [smem:[#allocation4]] %s1
  $region1: #{tpu_custom_call.1} parent=0
    #allocation5 [shape = 'u8[512]{0}', space=smem, size = 0x200, scoped, tag = 'input window, operand 0, single buffered']
    #allocation6 [shape = 's32[2]{0}', space=sflag, size = 0x8, scoped, tag = 'scoped memory for tpu_custom_call.1']
    #allocation7 [shape = 's32[2]{0}', space=sflag, size = 0x8, scoped, tag = 'scoped memory for tpu_custom_call.1']
    #allocation8 [shape = 's32[2]{0}', space=sflag, size = 0x8, scoped, tag = 'scoped memory for tpu_custom_call.1']
    #allocation9 [shape = 'u8[32768]{0}', space=vmem, size = 0x8000, scoped, tag = 'input window, operand 2']
    #allocation10 [shape = 'u8[16384]{0}', space=vmem, size = 0x4000, scoped, tag = 'output window, operand 0']
    %9 = vsyncpa [#allocation8], 0
    %10 = vsyncpa [#allocation6], 0
    %s11 = scalar_lea.sflag [#allocation6], 1
    %12 = vsyncpa %s11, 0
    %13 = vsyncpa [#allocation7], 0
    %s14 = scalar_lea.sflag [#allocation7], 1
    %15 = vsyncpa %s14, 0
    loop: start=0, step=1, limit=6
    $region2: #{tpu_custom_call.1} parent=1 // loop_pre_header
      _
    $region3: #{tpu_custom_call.1} parent=1 // loop_header
      %s17 = sphi 0, %s21
      %p18 = scmp.ge.s32.totalorder %s17, 6
      %s24 = sphi 0, %s36
      %s25 = sphi 0, %s32
      %s26 = sphi 0, %s24
      %s27 = sphi 0, %s25
      %s28 = sphi 0, %s26
      %s29 = sphi 0, %s27
      %s37 = sphi 0, %s37
      %s39 = sphi 0, %s37
      %s40 = sphi 0, %s39
      %s54 = sphi 0, %s40
      %s58 = sphi 0, %s58
      %s60 = sphi 0, %s58
      %s61 = sphi 0, %s60
      %s75 = sphi 0, %s61
      %s83 = sphi 0, %s85
      %s86 = sphi 0, %s83
      %s87 = sphi 0, %s86
      %s103 = sphi 0, %s87
      %s109 = sphi 0, %s111
      %s112 = sphi 0, %s109
      %s113 = sphi 0, %s112
      %s129 = sphi 0, %s113
    $region4: #{tpu_custom_call.1} parent=1 // loop_header_branch
      %20 = sbr.rel (%p18) target = $region8
    $region5: #{tpu_custom_call.1} parent=1 // loop_body
      %s22 = ssub.s32 %s17, 1
      %s23 = ssub.s32 %s17, 2
      %s30 = sadd.s32 1, %s25
      %p31 = scmp.ge.s32.totalorder %s30, 2
      %s32 = scalar_select %p31, 0, %s30
      %s33 = sadd.s32 1, %s24
      %s34 = scalar_select %p31, %s33, %s24
      %p35 = scmp.ge.s32.totalorder %s34, 2
      %s36 = scalar_select %p35, 0, %s34
      %s38 = sadd.s32 %s37, 1
      %p41 = scmp.eq.s32.totalorder %s17, 3
      %p42 = scmp.ne.s32.totalorder %s37, %s39
      %p43 = scmp.eq.s32.totalorder %s17, 0
      %p44 = por %p42, %p43
      %p45 = scmp.ne.s32.totalorder %s37, %s39
      %p46 = scmp.eq.s32.totalorder %s22, 3
      %p47 = por %p45, %p46
      %p48 = scmp.ne.s32.totalorder %s39, %s40
      %p49 = scmp.eq.s32.totalorder %s22, 0
      %p50 = por %p48, %p49
      %p51 = scmp.ne.s32.totalorder %s39, %s40
      %p52 = scmp.eq.s32.totalorder %s23, 3
      %p53 = por %p51, %p52
      %p55 = scmp.ne.s32.totalorder %s40, %s54
      %p56 = scmp.eq.s32.totalorder %s23, 0
      %p57 = por %p55, %p56
      %s59 = sadd.s32 %s58, 1
      %p62 = scmp.eq.s32.totalorder %s17, 3
      %p63 = scmp.ne.s32.totalorder %s58, %s60
      %p64 = scmp.eq.s32.totalorder %s17, 0
      %p65 = por %p63, %p64
      %p66 = scmp.ne.s32.totalorder %s58, %s60
      %p67 = scmp.eq.s32.totalorder %s22, 3
      %p68 = por %p66, %p67
      %p69 = scmp.ne.s32.totalorder %s60, %s61
      %p70 = scmp.eq.s32.totalorder %s22, 0
      %p71 = por %p69, %p70
      %p72 = scmp.ne.s32.totalorder %s60, %s61
      %p73 = scmp.eq.s32.totalorder %s23, 3
      %p74 = por %p72, %p73
      %p76 = scmp.ne.s32.totalorder %s61, %s75
      %p77 = scmp.eq.s32.totalorder %s23, 0
      %p78 = por %p76, %p77
      %s79 = ssub.s32 %s24, %s36
      %s80 = ssub.s32 %s25, %s32
      %s81 = sor.u32 %s79, %s80
      %p82 = scmp.eq.s32.totalorder %s81, 0
      %s84 = sadd.s32 %s83, 1
      %s85 = scalar_select %p82, %s83, %s84
      %p88 = pneg %p82
      %p89 = scmp.eq.s32.totalorder %s17, 3
      %p90 = por %p88, %p89
      %p91 = scmp.ne.s32.totalorder %s83, %s86
      %p92 = scmp.eq.s32.totalorder %s17, 0
      %p93 = por %p91, %p92
      %p94 = scmp.ne.s32.totalorder %s83, %s86
      %p95 = scmp.eq.s32.totalorder %s22, 3
      %p96 = por %p94, %p95
      %p97 = scmp.ne.s32.totalorder %s86, %s87
      %p98 = scmp.eq.s32.totalorder %s22, 0
      %p99 = por %p97, %p98
      %p100 = scmp.ne.s32.totalorder %s86, %s87
      %p101 = scmp.eq.s32.totalorder %s23, 3
      %p102 = por %p100, %p101
      %p104 = scmp.ne.s32.totalorder %s87, %s103
      %p105 = scmp.eq.s32.totalorder %s23, 0
      %p106 = por %p104, %p105
      %s107 = ssub.s32 %s24, %s36
      %p108 = scmp.eq.s32.totalorder %s107, 0
      %s110 = sadd.s32 %s109, 1
      %s111 = scalar_select %p108, %s109, %s110
      %p114 = pneg %p108
      %p115 = scmp.eq.s32.totalorder %s17, 3
      %p116 = por %p114, %p115
      %p117 = scmp.ne.s32.totalorder %s109, %s112
      %p118 = scmp.eq.s32.totalorder %s17, 0
      %p119 = por %p117, %p118
      %p120 = scmp.ne.s32.totalorder %s109, %s112
      %p121 = scmp.eq.s32.totalorder %s22, 3
      %p122 = por %p120, %p121
      %p123 = scmp.ne.s32.totalorder %s112, %s113
      %p124 = scmp.eq.s32.totalorder %s22, 0
      %p125 = por %p123, %p124
      %p126 = scmp.ne.s32.totalorder %s112, %s113
      %p127 = scmp.eq.s32.totalorder %s23, 3
      %p128 = por %p126, %p127
      %p130 = scmp.ne.s32.totalorder %s113, %s129
      %p131 = scmp.eq.s32.totalorder %s23, 0
      %p132 = por %p130, %p131
      %p133 = scmp.le.s32.totalorder 1, %s17
      %p134 = scmp.lt.s32.totalorder %s17, 5
      %p135 = pnand %p133, %p134
      %p136 = pneg %p135
      // Predicated region
      $region9: #{tpu_custom_call.1} parent=5 // pred_check
        _
      $region10: #{tpu_custom_call.1} parent=5 // pred_check_branch
        %138 = sbr.rel (%p135) target = $region12
      $region11: #{tpu_custom_call.1} parent=5 // pred_region
        %s139 = ssub.s32 %s17, 1
        // Predicated region
        $region13: #{tpu_custom_call.1} parent=11 // pred_check
          %p140 = pneg %p50
        $region14: #{tpu_custom_call.1} parent=11 // pred_check_branch
          %142 = sbr.rel (%p140) target = $region16
        $region15: #{tpu_custom_call.1} parent=11 // pred_region
          %144 = vsyncadd [#allocation8], 0
          %s146 = sshll.u32 %s0, 4
          %s147 = int_to_ptr.vmem [resolvable:$true] %s146
          %149 = dma.vmem_to_smem %s147, 16, [#allocation5], [#allocation8]
        $region16: #{tpu_custom_call.1} parent=11 // pred_fallthru
          _
        // Predicated region
        $region17: #{tpu_custom_call.1} parent=11 // pred_check
          %p150 = pneg %p71
        $region18: #{tpu_custom_call.1} parent=11 // pred_check_branch
          %152 = sbr.rel (%p150) target = $region20
        $region19: #{tpu_custom_call.1} parent=11 // pred_region
          _
        $region20: #{tpu_custom_call.1} parent=11 // pred_fallthru
          _
      $region12: #{tpu_custom_call.1} parent=5 // pred_fallthru
        _
      %p153 = scmp.lt.s32.totalorder %s17, 4
      // Predicated region
      $region21: #{tpu_custom_call.1} parent=5 // pred_check
        %p154 = pneg %p153
      $region22: #{tpu_custom_call.1} parent=5 // pred_check_branch
        %156 = sbr.rel (%p154) target = $region24
      $region23: #{tpu_custom_call.1} parent=5 // pred_region
        // Predicated region
        $region25: #{tpu_custom_call.1} parent=23 // pred_check
          %p157 = pneg %p93
        $region26: #{tpu_custom_call.1} parent=23 // pred_check_branch
          %159 = sbr.rel (%p157) target = $region28
        $region27: #{tpu_custom_call.1} parent=23 // pred_region
          %s160 = sand.u32 %s83, 1
          %s161 = scalar_lea.sflag [#allocation6], %s160
          %s162 = sand.u32 %s83, 1
          %s163 = smul.addr %s162, 32
          %s164 = scalar_lea.vmem [#allocation9], %s163
          %s165 = smul.u32 2, %s25
          %167 = vsyncadd %s161, 0
          %s168 = smul.addr %s165, 2
          %s169 = smul.addr %s24, 8
          %s170 = sadd.s32 %s168, %s169
          %s171 = smul.addr %s170, 8
          %s172 = scalar_lea.hbm %s2, %s171
          %s173 = sshll.u32 %s172, 4
          %s174 = int_to_ptr.hbm [resolvable:$true] %s173
          %s175 = sshll.u32 %s164, 4
          %s176 = int_to_ptr.vmem [resolvable:$true] %s175
          %181 = dma.hbm_to_vmem [thread:$0]  %s174, 512, %s176, %s161, 128, 128, 8
        $region28: #{tpu_custom_call.1} parent=23 // pred_fallthru
          _
      $region24: #{tpu_custom_call.1} parent=5 // pred_fallthru
        _
      %p182 = scmp.le.s32.totalorder 1, %s17
      %p183 = scmp.lt.s32.totalorder %s17, 5
      %p184 = pnand %p182, %p183
      %p185 = pneg %p184
      // Predicated region
      $region29: #{tpu_custom_call.1} parent=5 // pred_check
        _
      $region30: #{tpu_custom_call.1} parent=5 // pred_check_branch
        %187 = sbr.rel (%p184) target = $region32
      $region31: #{tpu_custom_call.1} parent=5 // pred_region
        %s188 = ssub.s32 %s17, 1
        // Predicated region
        $region33: #{tpu_custom_call.1} parent=31 // pred_check
          %p189 = pneg %p50
        $region34: #{tpu_custom_call.1} parent=31 // pred_check_branch
          %191 = sbr.rel (%p189) target = $region36
        $region35: #{tpu_custom_call.1} parent=31 // pred_region
          %193 = dma.done [#allocation8], 16
        $region36: #{tpu_custom_call.1} parent=31 // pred_fallthru
          _
        %s194 = sand.u32 %s86, 1
        %s195 = scalar_lea.sflag [#allocation6], %s194
        %s196 = sand.u32 %s86, 1
        %s197 = smul.addr %s196, 32
        %s198 = scalar_lea.vmem [#allocation9], %s197
        // Predicated region
        $region37: #{tpu_custom_call.1} parent=31 // pred_check
          %p199 = pneg %p99
        $region38: #{tpu_custom_call.1} parent=31 // pred_check_branch
          %201 = sbr.rel (%p199) target = $region40
        $region39: #{tpu_custom_call.1} parent=31 // pred_region
          %203 = dma.done %s195, 512
        $region40: #{tpu_custom_call.1} parent=31 // pred_fallthru
          _
        %204 = sfence
        %p205 = pneg %p50
        %p206 = pneg %p47
        %p207 = pneg %p71
        %p208 = pneg %p68
        %s209 = sand.u32 %s86, 1
        %s210 = scalar_lea.sflag [#allocation6], %s209
        %s211 = sand.u32 %s86, 1
        %s212 = smul.addr %s211, 32
        %s213 = scalar_lea.vmem [#allocation9], %s212
        %p214 = pneg %p99
        %p215 = pneg %p96
        %p216 = pneg %p125
        %p217 = pneg %p122
        %s218 = sand.u32 %s112, 1
        %s219 = scalar_lea.sflag [#allocation7], %s218
        %s220 = sand.u32 %s112, 1
        %s221 = smul.addr %s220, 16
        %s222 = scalar_lea.vmem [#allocation10], %s221
        %s223 = smul.u32 2, %s27
        %p224 = scmp.eq.s32.totalorder %s26, 0
        %p225 = scmp.eq.s32.totalorder %s27, 0
        %p226 = pnand %p224, %p225
        %p227 = pneg %p226
        // Predicated region
        $region41: #{tpu_custom_call.1} parent=31 // pred_check
          _
        $region42: #{tpu_custom_call.1} parent=31 // pred_check_branch
          %229 = sbr.rel (%p226) target = $region44
        $region43: #{tpu_custom_call.1} parent=31 // pred_region
          %230 = vst [vmem:[#allocation3] sm:$0xff] 0.0
          %231 = vst [vmem:[#allocation3 + $0x8] sm:$0xff] 0.0
          %vm232 = vcmask 130048
          %233 = vst.msk [vmem:[#allocation3 + $0x10] sm:$0xff] %vm232, 0.0
          %234 = vst [vmem:[#allocation3 + $0x18] sm:$0xff] 0.0
          %235 = vst [vmem:[#allocation3 + $0x20] sm:$0xff] 0.0
          %236 = vst.msk [vmem:[#allocation3 + $0x28] sm:$0xff] %vm232, 0.0
          %237 = vst [vmem:[#allocation3 + $0x30] sm:$0xff] 0.0
          %238 = vst [vmem:[#allocation3 + $0x38] sm:$0xff] 0.0
          %239 = vst.msk [vmem:[#allocation3 + $0x40] sm:$0xff] %vm232, 0.0
          %240 = vst [vmem:[#allocation3 + $0x48] sm:$0xff] 0.0
          %241 = vst [vmem:[#allocation3 + $0x50] sm:$0xff] 0.0
          %242 = vst.msk [vmem:[#allocation3 + $0x58] sm:$0xff] %vm232, 0.0
        $region44: #{tpu_custom_call.1} parent=31 // pred_fallthru
          _
        // Predicated region
        $region45: #{tpu_custom_call.1} parent=31 // pred_check
          %p243 = pneg %p225
        $region46: #{tpu_custom_call.1} parent=31 // pred_check_branch
          %245 = sbr.rel (%p243) target = $region48
        $region47: #{tpu_custom_call.1} parent=31 // pred_region
          %vm246 = vcmask 130048
          %247 = vst.msk [vmem:[#allocation2] sm:$0xff] %vm246, -inf
          %248 = vst.msk [vmem:[#allocation2 + $0x8] sm:$0xff] %vm246, -inf
          %249 = vst.msk [vmem:[#allocation3 + $0x20] sm:$0xff] %vm246, 0.0
          %250 = vst.msk [vmem:[#allocation3 + $0x38] sm:$0xff] %vm246, 0.0
        $region48: #{tpu_custom_call.1} parent=31 // pred_fallthru
          _
        %v251 = vld [vmem:[%s198] sm:$0xff]
        %v252 = vld [vmem:[%s198 + $0x8] sm:$0xff]
        %v253 = vld [vmem:[%s198 + $0x10] sm:$0xff]
        %v254 = vld [vmem:[%s198 + $0x18] sm:$0xff]
        %v255 = vld [vmem:[#allocation2] sm:$0xff]
        %v256 = vld [vmem:[#allocation2 + $0x8] sm:$0xff]
        %vm257 = vcmask 130048
        %v258 = vsel %vm257, %v251, -inf
        %v259 = vsel %vm257, %v253, -inf
        %v260 = vmax.f32 %v258, %v259
        %v261 = vsel %vm257, %v252, -inf
        %v262 = vsel %vm257, %v254, -inf
        %v263 = vmax.f32 %v261, %v262
        %v264 = vmax.f32 %v255, %v260
        %v265 = vmax.f32 %v256, %v263
        %266 = vst.msk [vmem:[#allocation2] sm:$0xff] %vm257, %v264
        %267 = vst.msk [vmem:[#allocation2 + $0x8] sm:$0xff] %vm257, %v265
        %v268 = vld [vmem:[#allocation3 + $0x20] sm:$0xff]
        %v269 = vld [vmem:[#allocation3 + $0x38] sm:$0xff]
        %v270 = vsel %vm257, %v251, 0.0
        %v271 = vsel %vm257, %v253, 0.0
        %v272 = vadd.f32 %v270, %v271
        %v273 = vsel %vm257, %v252, 0.0
        %v274 = vsel %vm257, %v254, 0.0
        %v275 = vadd.f32 %v273, %v274
        %v276 = vadd.f32 %v268, %v272
        %v277 = vadd.f32 %v269, %v275
        %278 = vst.msk [vmem:[#allocation3 + $0x20] sm:$0xff] %vm257, %v276
        %279 = vst.msk [vmem:[#allocation3 + $0x38] sm:$0xff] %vm257, %v277
        %p280 = scmp.eq.s32.totalorder %s27, 1
        // Predicated region
        $region49: #{tpu_custom_call.1} parent=31 // pred_check
          %p281 = pneg %p280
        $region50: #{tpu_custom_call.1} parent=31 // pred_check_branch
          %283 = sbr.rel (%p281) target = $region52
        $region51: #{tpu_custom_call.1} parent=31 // pred_region
          %v284 = vld [vmem:[#allocation3 + $0x20] sm:$0xff]
          %v285 = vld [vmem:[#allocation3 + $0x38] sm:$0xff]
          %v286 = vmul.f32 %v284, 0.25
          %v287 = vmul.f32 %v285, 0.25
          %v288 = vld [vmem:[#allocation2] sm:$0xff]
          %v289 = vld [vmem:[#allocation2 + $0x8] sm:$0xff]
          %v290 = vadd.f32 %v286, %v288
          %v291 = vadd.f32 %v287, %v289
          %292 = vst.msk [vmem:[#allocation3 + $0x20] sm:$0xff] %vm257, %v290
          %293 = vst.msk [vmem:[#allocation3 + $0x38] sm:$0xff] %vm257, %v291
          %s294 = sld [smem:[#allocation4]]
          %v295 = vstv %s294
          %v296 = vld [vmem:[#allocation3] sm:$0x80]
          %v297 = vld [vmem:[#allocation3 + $0x8] sm:$0x80]
          %v298 = vld [vmem:[#allocation3 + $0x18] sm:$0xff]
          %v299 = vld [vmem:[#allocation3 + $0x20] sm:$0xff]
          %v300 = vld [vmem:[#allocation3 + $0x30] sm:$0x7f]
          %v301 = vld [vmem:[#allocation3 + $0x38] sm:$0x7f]
          %s302 = sld [smem:[#allocation5]]
          %v303 = vstv %s302
          %v304 = vmul.f32 %v303, %v296
          %v305 = vmul.f32 %v303, %v297
          %v306 = vmul.f32 %v303, %v298
          %v307 = vmul.f32 %v303, %v299
          %v308 = vmul.f32 %v303, %v300
          %v309 = vmul.f32 %v303, %v301
          %v310 = vadd.f32 %v295, %v304
          %v311 = vadd.f32 %v295, %v305
          %v312 = vadd.f32 %v295, %v306
          %v313 = vadd.f32 %v295, %v307
          %v314 = vadd.f32 %v295, %v308
          %v315 = vadd.f32 %v295, %v309
          %s316 = sld [smem:[#allocation5 + $0x1]]
          %v317 = vstv %s316
          %v318 = vmul.f32 %v317, %v297
          %v319 = vmul.f32 %v317, %v299
          %v320 = vmul.f32 %v317, %v301
          %324 = vrot.lane.b32.xlu0 %v318, 127
          %v325 = vpop.permute.xlu0 %324
          %326 = vrot.lane.b32.xlu0 %v319, 127
          %v327 = vpop.permute.xlu0 %326
          %328 = vrot.lane.b32.xlu0 %v320, 127
          %v329 = vpop.permute.xlu0 %328
          %v333 = vadd.f32 %v310, %v325
          %v334 = vadd.f32 %v311, %v325
          %v335 = vadd.f32 %v312, %v327
          %v336 = vadd.f32 %v313, %v327
          %v337 = vadd.f32 %v314, %v329
          %v338 = vadd.f32 %v315, %v329
          %s339 = sld [smem:[#allocation5 + $0x2]]
          %v340 = vstv %s339
          %v341 = vmul.f32 %v340, %v297
          %v342 = vmul.f32 %v340, %v299
          %v343 = vmul.f32 %v340, %v301
          %347 = vrot.lane.b32.xlu0 %v341, 126
          %v348 = vpop.permute.xlu0 %347
          %349 = vrot.lane.b32.xlu0 %v342, 126
          %v350 = vpop.permute.xlu0 %349
          %351 = vrot.lane.b32.xlu0 %v343, 126
          %v352 = vpop.permute.xlu0 %351
          %v356 = vadd.f32 %v333, %v348
          %v357 = vadd.f32 %v334, %v348
          %v358 = vadd.f32 %v335, %v350
          %v359 = vadd.f32 %v336, %v350
          %v360 = vadd.f32 %v337, %v352
          %v361 = vadd.f32 %v338, %v352
          %v362 = vld [vmem:[#allocation3 + $0x30] sm:$0xff]
          %v363 = vld [vmem:[#allocation3 + $0x38] sm:$0xff]
          %s364 = sld [smem:[#allocation5 + $0x3]]
          %v365 = vstv %s364
          %v366 = vmul.f32 %v365, %v298
          %v367 = vmul.f32 %v365, %v299
          %v368 = vmul.f32 %v365, %v362
          %v369 = vmul.f32 %v365, %v363
          %vm374 = vcmask 1046528
          %v375 = vrot.slane %v366, 1
          %v376 = vrot.slane %v367, 1
          %v377 = vrot.slane %v368, 1
          %v378 = vsel %vm374, %v375, %v377
          %v379 = vrot.slane %v369, 1
          %v380 = vsel %vm374, %v376, %v379
          %v387 = vadd.f32 %v356, %v375
          %v388 = vadd.f32 %v357, %v376
          %v389 = vadd.f32 %v358, %v378
          %v390 = vadd.f32 %v359, %v380
          %v391 = vadd.f32 %v360, %v377
          %v392 = vadd.f32 %v361, %v379
          %s393 = sld [smem:[#allocation5 + $0x4]]
          %v394 = vstv %s393
          %v395 = vmul.f32 %v394, %v299
          %v396 = vmul.f32 %v394, %v363
          %v399 = vrot.slane %v395, 1
          %v400 = vrot.slane %v396, 1
          %v401 = vsel %vm374, %v399, %v400
          %402 = vrot.lane.b32.xlu0 %v399, 127
          %v403 = vpop.permute.xlu0 %402
          %404 = vrot.lane.b32.xlu0 %v401, 127
          %v405 = vpop.permute.xlu0 %404
          %406 = vrot.lane.b32.xlu0 %v400, 127
          %v407 = vpop.permute.xlu0 %406
          %v411 = vadd.f32 %v387, %v403
          %v412 = vadd.f32 %v388, %v403
          %v413 = vadd.f32 %v389, %v405
          %v414 = vadd.f32 %v390, %v405
          %v415 = vadd.f32 %v391, %v407
          %v416 = vadd.f32 %v392, %v407
          %s417 = sld [smem:[#allocation5 + $0x5]]
          %v418 = vstv %s417
          %v419 = vmul.f32 %v418, %v299
          %v420 = vmul.f32 %v418, %v363
          %v423 = vrot.slane %v419, 1
          %v424 = vrot.slane %v420, 1
          %v425 = vsel %vm374, %v423, %v424
          %426 = vrot.lane.b32.xlu0 %v423, 126
          %v427 = vpop.permute.xlu0 %426
          %428 = vrot.lane.b32.xlu0 %v425, 126
          %v429 = vpop.permute.xlu0 %428
          %430 = vrot.lane.b32.xlu0 %v424, 126
          %v431 = vpop.permute.xlu0 %430
          %v435 = vadd.f32 %v411, %v427
          %v436 = vadd.f32 %v412, %v427
          %v437 = vadd.f32 %v413, %v429
          %v438 = vadd.f32 %v414, %v429
          %v439 = vadd.f32 %v415, %v431
          %v440 = vadd.f32 %v416, %v431
          %v441 = vld [vmem:[#allocation3 + $0x18] sm:$0xfe]
          %v442 = vld [vmem:[#allocation3 + $0x20] sm:$0xfe]
          %v443 = vld [vmem:[#allocation3 + $0x30] sm:$0xff]
          %v444 = vld [vmem:[#allocation3 + $0x38] sm:$0xff]
          %v445 = vld [vmem:[#allocation3 + $0x48] sm:$0x1]
          %v446 = vld [vmem:[#allocation3 + $0x50] sm:$0x1]
          %s447 = sld [smem:[#allocation5 + $0x6]]
          %v448 = vstv %s447
          %v449 = vmul.f32 %v448, %v441
          %v450 = vmul.f32 %v448, %v442
          %v451 = vmul.f32 %v448, %v443
          %v452 = vmul.f32 %v448, %v444
          %v453 = vmul.f32 %v448, %v445
          %v454 = vmul.f32 %v448, %v446
          %vm461 = vcmask 1045504
          %v462 = vrot.slane %v449, 2
          %v463 = vrot.slane %v450, 2
          %v464 = vrot.slane %v451, 2
          %v465 = vsel %vm461, %v462, %v464
          %v466 = vrot.slane %v452, 2
          %v467 = vsel %vm461, %v463, %v466
          %v468 = vrot.slane %v453, 2
          %v469 = vsel %vm461, %v464, %v468
          %v470 = vrot.slane %v454, 2
          %v471 = vsel %vm461, %v466, %v470
          %v478 = vadd.f32 %v435, %v462
          %v479 = vadd.f32 %v436, %v463
          %v480 = vadd.f32 %v437, %v465
          %v481 = vadd.f32 %v438, %v467
          %v482 = vadd.f32 %v439, %v469
          %v483 = vadd.f32 %v440, %v471
          %s484 = sld [smem:[#allocation5 + $0x7]]
          %v485 = vstv %s484
          %v486 = vmul.f32 %v485, %v442
          %v487 = vmul.f32 %v485, %v444
          %v488 = vmul.f32 %v485, %v446
          %v492 = vrot.slane %v486, 2
          %v493 = vrot.slane %v487, 2
          %v494 = vsel %vm461, %v492, %v493
          %v495 = vrot.slane %v488, 2
          %v496 = vsel %vm461, %v493, %v495
          %497 = vrot.lane.b32.xlu0 %v492, 127
          %v498 = vpop.permute.xlu0 %497
          %499 = vrot.lane.b32.xlu0 %v494, 127
          %v500 = vpop.permute.xlu0 %499
          %501 = vrot.lane.b32.xlu0 %v496, 127
          %v502 = vpop.permute.xlu0 %501
          %v506 = vadd.f32 %v478, %v498
          %v507 = vadd.f32 %v479, %v498
          %v508 = vadd.f32 %v480, %v500
          %v509 = vadd.f32 %v481, %v500
          %v510 = vadd.f32 %v482, %v502
          %v511 = vadd.f32 %v483, %v502
          %s512 = sld [smem:[#allocation5 + $0x8]]
          %v513 = vstv %s512
          %v514 = vmul.f32 %v513, %v442
          %v515 = vmul.f32 %v513, %v444
          %v516 = vmul.f32 %v513, %v446
          %v520 = vrot.slane %v514, 2
          %v521 = vrot.slane %v515, 2
          %v522 = vsel %vm461, %v520, %v521
          %v523 = vrot.slane %v516, 2
          %v524 = vsel %vm461, %v521, %v523
          %525 = vrot.lane.b32.xlu0 %v520, 126
          %v526 = vpop.permute.xlu0 %525
          %527 = vrot.lane.b32.xlu0 %v522, 126
          %v528 = vpop.permute.xlu0 %527
          %529 = vrot.lane.b32.xlu0 %v524, 126
          %v530 = vpop.permute.xlu0 %529
          %v534 = vadd.f32 %v506, %v526
          %v535 = vadd.f32 %v507, %v526
          %v536 = vadd.f32 %v508, %v528
          %v537 = vadd.f32 %v509, %v528
          %v538 = vadd.f32 %v510, %v530
          %v539 = vadd.f32 %v511, %v530
          %546 = vrot.lane.b32.xlu0 %v534, 1
          %v547 = vpop.permute.xlu0 %546
          %548 = vrot.lane.b32.xlu0 %v535, 1
          %v549 = vpop.permute.xlu0 %548
          %550 = vrot.lane.b32.xlu0 %v536, 1
          %v551 = vpop.permute.xlu0 %550
          %552 = vrot.lane.b32.xlu0 %v537, 1
          %v553 = vpop.permute.xlu0 %552
          %554 = vrot.lane.b32.xlu0 %v538, 1
          %v555 = vpop.permute.xlu0 %554
          %556 = vrot.lane.b32.xlu0 %v539, 1
          %v557 = vpop.permute.xlu0 %556
          %vm558 = vcmask 7168
          %v559 = vsel %vm558, %v547, %v549
          %v560 = vsel %vm558, %v551, %v553
          %v561 = vsel %vm558, %v555, %v557
          %vm565 = vcmask 130055
          %566 = vst.msk [vmem:[%s222 - $0x7] sm:$0x80] %vm565, %v559
          %567 = vst.msk [vmem:[%s222 + $0x1] sm:$0xff] %vm257, %v560
          %vm568 = vcmask 129024
          %569 = vst.msk [vmem:[%s222 + $0x9] sm:$0x7f] %vm568, %v561
        $region52: #{tpu_custom_call.1} parent=31 // pred_fallthru
          _
        %s570 = sand.u32 %s112, 1
        %s571 = scalar_lea.sflag [#allocation7], %s570
        %s572 = sand.u32 %s112, 1
        %s573 = smul.addr %s572, 16
        %s574 = scalar_lea.vmem [#allocation10], %s573
        // Predicated region
        $region53: #{tpu_custom_call.1} parent=31 // pred_check
          %p575 = pneg %p122
        $region54: #{tpu_custom_call.1} parent=31 // pred_check_branch
          %577 = sbr.rel (%p575) target = $region56
        $region55: #{tpu_custom_call.1} parent=31 // pred_region
          %579 = vsyncadd %s571, 0
          %s580 = smul.addr %s26, 2
          %s581 = smul.addr %s580, 8
          %s582 = scalar_lea.hbm %s3, %s581
          %s583 = sshll.u32 %s574, 4
          %s584 = int_to_ptr.vmem [resolvable:$true] %s583
          %s585 = sshll.u32 %s582, 4
          %s586 = int_to_ptr.hbm [resolvable:$true] %s585
          %591 = dma.vmem_to_hbm [thread:$0]  %s584, 256, %s586, %s571, 128, 128, 8
        $region56: #{tpu_custom_call.1} parent=31 // pred_fallthru
          _
      $region32: #{tpu_custom_call.1} parent=5 // pred_fallthru
        _
      %p592 = scmp.le.s32.totalorder 2, %s17
      // Predicated region
      $region57: #{tpu_custom_call.1} parent=5 // pred_check
        %p593 = pneg %p592
      $region58: #{tpu_custom_call.1} parent=5 // pred_check_branch
        %595 = sbr.rel (%p593) target = $region60
      $region59: #{tpu_custom_call.1} parent=5 // pred_region
        %s596 = ssub.s32 %s17, 2
        // Predicated region
        $region61: #{tpu_custom_call.1} parent=59 // pred_check
          %p597 = pneg %p128
        $region62: #{tpu_custom_call.1} parent=59 // pred_check_branch
          %599 = sbr.rel (%p597) target = $region64
        $region63: #{tpu_custom_call.1} parent=59 // pred_region
          %s600 = sand.u32 %s113, 1
          %s601 = scalar_lea.sflag [#allocation7], %s600
          %s602 = sand.u32 %s113, 1
          %s603 = smul.addr %s602, 16
          %s604 = scalar_lea.vmem [#allocation10], %s603
          %606 = dma.done %s601, 256
        $region64: #{tpu_custom_call.1} parent=59 // pred_fallthru
          _
      $region60: #{tpu_custom_call.1} parent=5 // pred_fallthru
        _
    $region6: #{tpu_custom_call.1} parent=1 // loop_footer
      %s21 = sadd.s32 1, %s17
    $region7: #{tpu_custom_call.1} parent=1 // loop_footer_branch
      %16 = sbr.rel target = $region3
    $region8: #{tpu_custom_call.1} parent=1 // loop_exit
      _
    %607 = vsyncpa [#allocation6], 1
    %s608 = scalar_lea.sflag [#allocation6], 1
    %609 = vsyncpa %s608, 1
    %610 = vsyncpa [#allocation7], 1
    %s611 = scalar_lea.sflag [#allocation7], 1
    %612 = vsyncpa %s611, 1
    %613 = vsyncpa [#allocation8], 1
    %s614 = scalar_lea.sflag [#allocation8], 1
    %615 = vsyncpa %s614, 1

</llo_original>
